<compile_context>
chip_gen: v6e
topology: v6e:2x2x1
jax: 0.10.0
libtpu: 0.0.40
codegen_flags: <defaults>
</compile_context>

<pallas_src>
import jax
import jax.numpy as jnp
from jax.experimental import pallas as pl
from jax.experimental.pallas import tpu as pltpu


# ---------------------------------------------------------------------------
# Fused kernel
# ---------------------------------------------------------------------------
def _make_fused_gcn_kernel(layer_dims, n_layers, compute_dtype):
    """layer_dims: tuple of (c_in, c_out) *original* dims, for matmul ordering."""

    def kernel(a_ref, x_ref, *rest):
        w_refs = rest[:n_layers]
        o_ref = rest[n_layers]

        A = a_ref[...]                                                 # f32 (Np, Np)
        # D^-1/2 computed once. Padded rows have rowsum 0 -> d finite (1e-5 eps)
        # and only ever multiplies zeros, so padding is harmless.
        d = jax.lax.rsqrt(jnp.sum(A, axis=1, keepdims=True) + 1e-5)    # f32 (Np, 1)
        A_c = A.astype(compute_dtype)                                  # hoisted cast

        X = x_ref[...].astype(jnp.float32)
        for li in range(n_layers):
            c_in, c_out = layer_dims[li]
            W = w_refs[li][...]                      # already compute_dtype
            Xs = (d * X).astype(compute_dtype)       # fold left D^-1/2 (row scale)
            if c_out <= c_in:
                # Shrink the N x N matmul's non-N dim: do X @ W first.
                H = jnp.dot(Xs, W, preferred_element_type=jnp.float32)
                Y = d * jnp.dot(A_c, H.astype(compute_dtype),
                                preferred_element_type=jnp.float32)
            else:
                H = jnp.dot(A_c, Xs, preferred_element_type=jnp.float32)
                Y = d * jnp.dot(H.astype(compute_dtype), W,
                                preferred_element_type=jnp.float32)
            if li < n_layers - 1:
                # ReLU on the f32 accumulator (free VPU slot, no bf16 VPU needed).
                Y = jnp.maximum(Y, 0.0)
                # TODO(synk): nn.Dropout(p=0.5) is identity in eval mode; not applied.
            X = Y
        o_ref[...] = X.astype(o_ref.dtype)

    return kernel


# ---------------------------------------------------------------------------
# Wrapper
# ---------------------------------------------------------------------------
def _round_up(x, m):
    return (x + m - 1) // m * m


def _full_spec(shape):
    # Whole-array block (equal to full dims, so no (8,128) divisibility needed).
    return pl.BlockSpec(shape, lambda: (0,) * len(shape))


def gcn_forward(X, A, weights_t, *, compute_dtype=jnp.float32):
    """Fused GCN forward.  weights_t: list of W^T matrices, shape (in, out) each."""
    N, n_feat = X.shape
    n_classes = weights_t[-1].shape[1]
    n_layers = len(weights_t)

    # Lane-dense padding: feature dims -> multiples of 128, N -> multiple of 8.
    N_pad = _round_up(N, 8)
    dims = [n_feat] + [w.shape[1] for w in weights_t]
    dims_pad = [_round_up(d_, 128) for d_ in dims]

    A_p = jnp.zeros((N_pad, N_pad), jnp.float32).at[:N, :N].set(A.astype(jnp.float32))
    X_p = jnp.zeros((N_pad, dims_pad[0]), jnp.float32).at[:N, :n_feat].set(
        X.astype(jnp.float32))
    w_p = []
    for li, W in enumerate(weights_t):
        ci, co = W.shape
        w_p.append(jnp.zeros((dims_pad[li], dims_pad[li + 1]), compute_dtype)
                   .at[:ci, :co].set(W.astype(compute_dtype)))

    # The fused kernel keeps everything VMEM-resident (fine for moderate N).
    # TODO(synk): for N where A no longer fits VMEM, fall back to per-layer
    # (i, j, k)-tiled pallas_calls with a VMEM f32 accumulator scratch.
    itemsize = jnp.dtype(compute_dtype).itemsize
    resident = (A_p.size * 4 + X_p.size * 4 + N_pad * dims_pad[-1] * 4
                + sum(w.size * itemsize for w in w_p)
                + 2 * N_pad * max(dims_pad) * 4)          # in-kernel temporaries
    vmem_budget = 32 * 1024 * 1024                        # safe on v5e / v6e / v7x
    if resident > vmem_budget // 2:
        raise NotImplementedError("graph too large for the fused in-VMEM kernel")

    layer_dims = tuple(zip(dims[:-1], dims[1:]))          # original (unpadded) dims
    kernel = _make_fused_gcn_kernel(layer_dims, n_layers, compute_dtype)

    flops = 0
    for c_in, c_out in layer_dims:
        flops += 2 * N * N * min(c_in, c_out) + 2 * N * c_in * c_out
    bytes_accessed = (A_p.size * 4 + X_p.size * 4
                      + sum(w.size * itemsize for w in w_p)
                      + N_pad * dims_pad[-1] * 4)

    out = pl.pallas_call(
        kernel,
        out_shape=jax.ShapeDtypeStruct((N_pad, dims_pad[-1]), jnp.float32),
        in_specs=[_full_spec(A_p.shape), _full_spec(X_p.shape)]
                 + [_full_spec(w.shape) for w in w_p],
        out_specs=_full_spec((N_pad, dims_pad[-1])),
        cost_estimate=pl.CostEstimate(flops=flops, transcendentals=N_pad,
                                      bytes_accessed=bytes_accessed),
        compiler_params=pltpu.CompilerParams(vmem_limit_bytes=vmem_budget),
    )(A_p, X_p, *w_p)

    return out[:N, :n_classes]


def gcn_forward_ref(X, A, weights_t):
    """Plain-JAX reference (materializes A_hat like the torch code)."""
    d = jax.lax.rsqrt(jnp.sum(A, axis=1, keepdims=True) + 1e-5)
    A_hat = d * A * d.T
    for W_t in weights_t[:-1]:
        X = jnp.maximum(A_hat @ X @ W_t, 0.0)
    return A_hat @ X @ weights_t[-1]


# ---------------------------------------------------------------------------
# Main
# ---------------------------------------------------------------------------
if __name__ == "__main__":
    key = jax.random.PRNGKey(0)
    N = 16            # number of graph nodes
    n_features = 8
    hidden_dimensions = [32]
    n_classes = 4

    k_adj, k_x, k_w1, k_w2 = jax.random.split(key, 4)

    # Symmetric binary adjacency with self-loops (dense representation of the
    # torch sparse adjacency).
    rand = jax.random.uniform(k_adj, (N, N))
    adj = (rand + rand.T > 1.2).astype(jnp.float32)
    A = jnp.clip(adj + jnp.eye(N, dtype=jnp.float32), 0.0, 1.0)

    # Node feature matrix.
    X = jax.random.normal(k_x, (N, n_features), dtype=jnp.float32)

    # Deterministic Linear weights (stored transposed: (in, out)), no bias.
    dims = [n_features] + hidden_dimensions + [n_classes]
    w_keys = [k_w1, k_w2]
    weights_t = []
    for (c_in, c_out), kw in zip(zip(dims[:-1], dims[1:]), w_keys):
        bound = 1.0 / jnp.sqrt(jnp.float32(c_in))
        W = jax.random.uniform(kw, (c_out, c_in), minval=-bound, maxval=bound,
                               dtype=jnp.float32)
        weights_t.append(W.T)  # (in, out) so that X @ W_t == X @ W^T

    ref = gcn_forward_ref(X, A, weights_t)

    # Exact path: f32 matmul operands.
    logits = jax.block_until_ready(gcn_forward(X, A, weights_t))
    assert logits.shape == (N, n_classes)
    assert jnp.allclose(logits, ref, atol=1e-4, rtol=1e-4)

    # Fast path for v6e/v7x: bf16 MXU operands, f32 accumulation.
    logits_bf16 = jax.block_until_ready(
        gcn_forward(X, A, weights_t, compute_dtype=jnp.bfloat16))
    assert logits_bf16.shape == (N, n_classes)
    assert jnp.allclose(logits_bf16, ref, atol=1e-1, rtol=1e-1)

    print("KERNEL_OK")
</pallas_src>

<mosaic_0001>
module attributes {stable_mosaic.version = 11 : i64} {
  func.func @kernel(%arg0: memref<16x16xf32, #tpu.memory_space<vmem>>, %arg1: memref<16x128xf32, #tpu.memory_space<vmem>>, %arg2: memref<128x128xf32, #tpu.memory_space<vmem>>, %arg3: memref<128x128xf32, #tpu.memory_space<vmem>>, %arg4: memref<16x128xf32, #tpu.memory_space<vmem>>) attributes {dimension_semantics = [], scalar_prefetch = 0 : i64, scratch_operands = 0 : i64, tpu.core_type = #tpu.core_type<tc>} {
    %c0 = arith.constant 0 : index
    %c0_0 = arith.constant 0 : index
    %0 = vector.load %arg0[%c0, %c0_0] : memref<16x16xf32, #tpu.memory_space<vmem>>, vector<16x16xf32>
    %cst = arith.constant dense<0.000000e+00> : vector<16xf32>
    %1 = vector.multi_reduction <add>, %0, %cst [1] : vector<16x16xf32> to vector<16xf32>
    %2 = vector.shape_cast %1 : vector<16xf32> to vector<16x1xf32>
    %cst_1 = arith.constant 9.99999974E-6 : f32
    %3 = vector.broadcast %cst_1 : f32 to vector<16x1xf32>
    %4 = arith.addf %2, %3 : vector<16x1xf32>
    %5 = math.rsqrt %4 : vector<16x1xf32>
    %c0_2 = arith.constant 0 : index
    %c0_3 = arith.constant 0 : index
    %6 = vector.load %arg1[%c0_2, %c0_3] : memref<16x128xf32, #tpu.memory_space<vmem>>, vector<16x128xf32>
    %c0_4 = arith.constant 0 : index
    %c0_5 = arith.constant 0 : index
    %7 = vector.load %arg2[%c0_4, %c0_5] : memref<128x128xf32, #tpu.memory_space<vmem>>, vector<128x128xf32>
    %8 = vector.broadcast %5 : vector<16x1xf32> to vector<16x128xf32>
    %9 = arith.mulf %8, %6 : vector<16x128xf32>
    %cst_6 = arith.constant dense<0.000000e+00> : vector<16x128xf32>
    %10 = tpu.matmul %0, %9, %cst_6 {dimension_numbers = #tpu.dot_dimension_numbers<[1], [0], [0], [1], [0, 0, 1, 1], [], []>} : vector<16x16xf32>, vector<16x128xf32>, vector<16x128xf32> -> vector<16x128xf32>
    %cst_7 = arith.constant dense<0.000000e+00> : vector<16x128xf32>
    %11 = tpu.matmul %10, %7, %cst_7 {dimension_numbers = #tpu.dot_dimension_numbers<[1], [0], [0], [1], [0, 0, 1, 1], [], []>} : vector<16x128xf32>, vector<128x128xf32>, vector<16x128xf32> -> vector<16x128xf32>
    %12 = vector.broadcast %5 : vector<16x1xf32> to vector<16x128xf32>
    %13 = arith.mulf %12, %11 : vector<16x128xf32>
    %cst_8 = arith.constant 0.000000e+00 : f32
    %14 = vector.broadcast %cst_8 : f32 to vector<16x128xf32>
    %15 = arith.maximumf %13, %14 : vector<16x128xf32>
    %c0_9 = arith.constant 0 : index
    %c0_10 = arith.constant 0 : index
    %16 = vector.load %arg3[%c0_9, %c0_10] : memref<128x128xf32, #tpu.memory_space<vmem>>, vector<128x128xf32>
    %17 = vector.broadcast %5 : vector<16x1xf32> to vector<16x128xf32>
    %18 = arith.mulf %17, %15 : vector<16x128xf32>
    %cst_11 = arith.constant dense<0.000000e+00> : vector<16x128xf32>
    %19 = tpu.matmul %18, %16, %cst_11 {dimension_numbers = #tpu.dot_dimension_numbers<[1], [0], [0], [1], [0, 0, 1, 1], [], []>} : vector<16x128xf32>, vector<128x128xf32>, vector<16x128xf32> -> vector<16x128xf32>
    %cst_12 = arith.constant dense<0.000000e+00> : vector<16x128xf32>
    %20 = tpu.matmul %0, %19, %cst_12 {dimension_numbers = #tpu.dot_dimension_numbers<[1], [0], [0], [1], [0, 0, 1, 1], [], []>} : vector<16x16xf32>, vector<16x128xf32>, vector<16x128xf32> -> vector<16x128xf32>
    %21 = vector.broadcast %5 : vector<16x1xf32> to vector<16x128xf32>
    %22 = arith.mulf %21, %20 : vector<16x128xf32>
    %c0_13 = arith.constant 0 : index
    %c0_14 = arith.constant 0 : index
    %23 = vector.load %arg4[%c0_13, %c0_14] : memref<16x128xf32, #tpu.memory_space<vmem>>, vector<16x128xf32>
    tpu.vector_store %arg4[%c0_13, %c0_14], %22 {strides = array<i32>} : memref<16x128xf32, #tpu.memory_space<vmem>>, vector<16x128xf32>,
    return
  }
}

</mosaic_0001>

<llo_original>
// kernel: tpu_custom_call.1
$region0: #{tpu_custom_call.1}
  #allocation0 [shape = 'u32[]', space=smem, size = 0x4, offset = 0x4, fixed_abs, tag = 'smem constant byte address 0x4 - core index']
  #allocation1 [shape = 'u32[144,128]{1,0:T(1,128)}', space=vmem, size = 0x12000, scoped, tag = 'internal scratch']
  %s0 = inlined_call_operand.hbm [shape: f32[16,16], index: 0, kind: input, shape index: {}]
  %s1 = inlined_call_operand.hbm [shape: f32[16,128], index: 1, kind: input, shape index: {}]
  %s2 = inlined_call_operand.hbm [shape: f32[128,128], index: 2, kind: input, shape index: {}]
  %s3 = inlined_call_operand.hbm [shape: f32[128,128], index: 3, kind: input, shape index: {}]
  %s4 = inlined_call_operand.hbm [shape: f32[16,128], index: 4, kind: output, shape index: {}]
  %s5 = sld [smem:[#allocation0]]
  $region42: #{tpu_custom_call.1} parent=0
    _
  %s7 = ssub.s32 1, %s5
  %s8 = scalar_select 0, %s7, %s5
  $region1: #{tpu_custom_call.1} parent=0
    #allocation2 [shape = 'u8[8192]{0}', space=vmem, size = 0x2000, scoped, tag = 'input window, operand 0, single buffered']
    #allocation3 [shape = 's32[1]{0}', space=sflag, size = 0x4, scoped, tag = 'scoped memory for tpu_custom_call.1']
    #allocation4 [shape = 's32[1]{0}', space=sflag, size = 0x4, scoped, tag = 'scoped memory for tpu_custom_call.1']
    #allocation5 [shape = 'u8[8192]{0}', space=vmem, size = 0x2000, scoped, tag = 'input window, operand 1, single buffered']
    #allocation6 [shape = 's32[1]{0}', space=sflag, size = 0x4, scoped, tag = 'scoped memory for tpu_custom_call.1']
    #allocation7 [shape = 'u8[65536]{0}', space=vmem, size = 0x10000, scoped, tag = 'input window, operand 2, single buffered']
    #allocation8 [shape = 'u8[65536]{0}', space=vmem, size = 0x10000, scoped, tag = 'input window, operand 3, single buffered']
    #allocation9 [shape = 's32[1]{0}', space=sflag, size = 0x4, scoped, tag = 'scoped memory for tpu_custom_call.1']
    #allocation10 [shape = 'u8[8192]{0}', space=vmem, size = 0x2000, scoped, tag = 'output window, operand 0, single buffered']
    %9 = vsyncpa [#allocation3], 0
    %10 = vsyncpa [#allocation6], 0
    %11 = vsyncpa [#allocation9], 0
    %12 = vsyncpa [#allocation4], 0
    // Predicated region
    $region2: #{tpu_custom_call.1} parent=1 // pred_check
      _
    $region3: #{tpu_custom_call.1} parent=1 // pred_check_branch
      %14 = sbr.rel (0) target = $region5
    $region4: #{tpu_custom_call.1} parent=1 // pred_region
      %s16 = ssub.s32 256, 256
      %17 = vsyncadd [#allocation3], %s16
      %s18 = sshll.u32 [#allocation2], 4
      %s19 = int_to_ptr.vmem [resolvable:$true] %s18
      %24 = dma.hbm_to_vmem [thread:$0]  %s0, 256, %s19, [#allocation3], 128, 128, 8
    $region5: #{tpu_custom_call.1} parent=1 // pred_fallthru
      _
    // Predicated region
    $region6: #{tpu_custom_call.1} parent=1 // pred_check
      _
    $region7: #{tpu_custom_call.1} parent=1 // pred_check_branch
      %26 = sbr.rel (0) target = $region9
    $region8: #{tpu_custom_call.1} parent=1 // pred_region
      %s28 = ssub.s32 256, 256
      %29 = vsyncadd [#allocation6], %s28
      %s30 = sshll.u32 [#allocation5], 4
      %s31 = int_to_ptr.vmem [resolvable:$true] %s30
      %36 = dma.hbm_to_vmem [thread:$0]  %s1, 256, %s31, [#allocation6], 128, 128, 8
    $region9: #{tpu_custom_call.1} parent=1 // pred_fallthru
      _
    // Predicated region
    $region10: #{tpu_custom_call.1} parent=1 // pred_check
      _
    $region11: #{tpu_custom_call.1} parent=1 // pred_check_branch
      %38 = sbr.rel (0) target = $region13
    $region12: #{tpu_custom_call.1} parent=1 // pred_region
      %s40 = ssub.s32 2048, 2048
      %41 = vsyncadd [#allocation6], %s40
      %s42 = sshll.u32 [#allocation7], 4
      %s43 = int_to_ptr.vmem [resolvable:$true] %s42
      %48 = dma.hbm_to_vmem [thread:$0]  %s2, 2048, %s43, [#allocation6], 128, 128, 8
    $region13: #{tpu_custom_call.1} parent=1 // pred_fallthru
      _
    // Predicated region
    $region14: #{tpu_custom_call.1} parent=1 // pred_check
      _
    $region15: #{tpu_custom_call.1} parent=1 // pred_check_branch
      %50 = sbr.rel (0) target = $region17
    $region16: #{tpu_custom_call.1} parent=1 // pred_region
      %s52 = ssub.s32 2048, 2048
      %53 = vsyncadd [#allocation9], %s52
      %s54 = sshll.u32 [#allocation8], 4
      %s55 = int_to_ptr.vmem [resolvable:$true] %s54
      %60 = dma.hbm_to_vmem [thread:$0]  %s3, 2048, %s55, [#allocation9], 128, 128, 8
    $region17: #{tpu_custom_call.1} parent=1 // pred_fallthru
      _
    // Predicated region
    $region18: #{tpu_custom_call.1} parent=1 // pred_check
      _
    $region19: #{tpu_custom_call.1} parent=1 // pred_check_branch
      %62 = sbr.rel (0) target = $region21
    $region20: #{tpu_custom_call.1} parent=1 // pred_region
      %63 = dma.done [#allocation3], 256
    $region21: #{tpu_custom_call.1} parent=1 // pred_fallthru
      _
    // Predicated region
    $region22: #{tpu_custom_call.1} parent=1 // pred_check
      _
    $region23: #{tpu_custom_call.1} parent=1 // pred_check_branch
      %65 = sbr.rel (0) target = $region25
    $region24: #{tpu_custom_call.1} parent=1 // pred_region
      %66 = dma.done [#allocation6], 256
    $region25: #{tpu_custom_call.1} parent=1 // pred_fallthru
      _
    // Predicated region
    $region26: #{tpu_custom_call.1} parent=1 // pred_check
      _
    $region27: #{tpu_custom_call.1} parent=1 // pred_check_branch
      %68 = sbr.rel (0) target = $region29
    $region28: #{tpu_custom_call.1} parent=1 // pred_region
      %69 = dma.done [#allocation6], 2048
    $region29: #{tpu_custom_call.1} parent=1 // pred_fallthru
      _
    // Predicated region
    $region30: #{tpu_custom_call.1} parent=1 // pred_check
      _
    $region31: #{tpu_custom_call.1} parent=1 // pred_check_branch
      %71 = sbr.rel (0) target = $region33
    $region32: #{tpu_custom_call.1} parent=1 // pred_region
      %72 = dma.done [#allocation9], 2048
    $region33: #{tpu_custom_call.1} parent=1 // pred_fallthru
      _
    %v73 = vld [vmem:[#allocation2] sm:$0xff]
    %v74 = vld [vmem:[#allocation2 + $0x8] sm:$0xff]
    %vm75 = vcmask 130048
    %v76 = vsel %vm75, %v73, 0.0
    %77 = vadd.xlane.f32.xlu0 %v76
    %v78 = vpop.xlane.xlu0 %77
    %v79 = vsel %vm75, %v74, 0.0
    %80 = vadd.xlane.f32.xlu0 %v79
    %v81 = vpop.xlane.xlu0 %80
    %v82 = vadd.f32 %v78, 1e-05
    %v83 = vadd.f32 %v81, 1e-05
    %v84 = vrsqrt.pop %v82
    %v85 = vrsqrt.pop %v83
    %v86 = vld [vmem:[#allocation5] sm:$0xff]
    %v87 = vld [vmem:[#allocation5 + $0x8] sm:$0xff]
    %v88 = vld [vmem:[#allocation7] sm:$0xff]
    %v89 = vld [vmem:[#allocation7 + $0x8] sm:$0xff]
    %v90 = vld [vmem:[#allocation7 + $0x10] sm:$0xff]
    %v91 = vld [vmem:[#allocation7 + $0x18] sm:$0xff]
    %v92 = vld [vmem:[#allocation7 + $0x20] sm:$0xff]
    %v93 = vld [vmem:[#allocation7 + $0x28] sm:$0xff]
    %v94 = vld [vmem:[#allocation7 + $0x30] sm:$0xff]
    %v95 = vld [vmem:[#allocation7 + $0x38] sm:$0xff]
    %v96 = vld [vmem:[#allocation7 + $0x40] sm:$0xff]
    %v97 = vld [vmem:[#allocation7 + $0x48] sm:$0xff]
    %v98 = vld [vmem:[#allocation7 + $0x50] sm:$0xff]
    %v99 = vld [vmem:[#allocation7 + $0x58] sm:$0xff]
    %v100 = vld [vmem:[#allocation7 + $0x60] sm:$0xff]
    %v101 = vld [vmem:[#allocation7 + $0x68] sm:$0xff]
    %v102 = vld [vmem:[#allocation7 + $0x70] sm:$0xff]
    %v103 = vld [vmem:[#allocation7 + $0x78] sm:$0xff]
    %v104 = vmul.f32 %v84, %v86
    %v105 = vmul.f32 %v85, %v87
    %v107 = vsel %vm75, %v73, 0
    %v110 = vsel %vm75, %v74, 0
    %112 = vmatprep.subr.mxu0 0.0
    %113 = vmatpush1.msra.mxu0 0.0
    %114 = vmatprep.subr.mxu0 0.0
    %115 = vmatpush1.msra.mxu0 0.0
    %116 = vmatprep.subr.mxu0 0.0
    %117 = vmatpush1.msra.mxu0 0.0
    %118 = vmatprep.subr.mxu0 0.0
    %119 = vmatpush1.msra.mxu0 0.0
    %120 = vmatprep.subr.mxu0 0.0
    %121 = vmatpush1.msra.mxu0 0.0
    %122 = vmatprep.subr.mxu0 0.0
    %123 = vmatpush1.msra.mxu0 0.0
    %124 = vmatprep.subr.mxu0 0.0
    %125 = vmatpush1.msra.mxu0 0.0
    %126 = vmatprep.subr.mxu0 0.0
    %127 = vmatpush1.msra.mxu0 0.0
    %128 = vmatprep.subr.mxu0 0.0
    %129 = vmatpush1.msra.mxu0 0.0
    %130 = vmatprep.subr.mxu0 0.0
    %131 = vmatpush1.msra.mxu0 0.0
    %132 = vmatprep.subr.mxu0 0.0
    %133 = vmatpush1.msra.mxu0 0.0
    %134 = vmatprep.subr.mxu0 0.0
    %135 = vmatpush1.msra.mxu0 0.0
    %136 = vmatprep.subr.mxu0 0.0
    %137 = vmatpush1.msra.mxu0 0.0
    %138 = vmatprep.subr.mxu0 0.0
    %139 = vmatpush1.msra.mxu0 0.0
    %140 = vmatprep.subr.mxu0 0.0
    %141 = vmatpush1.msra.mxu0 %v105
    %142 = vmatprep.subr.mxu0 0.0
    %143 = vmatpush1.msra.mxu0 %v104
    %144 = vmatprep.subr.mxu0 0.0
    %145 = vmatpush2.msra.mxu0 0.0
    %146 = vmatprep.subr.mxu0 0.0
    %147 = vmatpush2.msra.mxu0 0.0
    %148 = vmatprep.subr.mxu0 0.0
    %149 = vmatpush2.msra.mxu0 0.0
    %150 = vmatprep.subr.mxu0 0.0
    %151 = vmatpush2.msra.mxu0 0.0
    %152 = vmatprep.subr.mxu0 0.0
    %153 = vmatpush2.msra.mxu0 0.0
    %154 = vmatprep.subr.mxu0 0.0
    %155 = vmatpush2.msra.mxu0 0.0
    %156 = vmatprep.subr.mxu0 0.0
    %157 = vmatpush2.msra.mxu0 0.0
    %158 = vmatprep.subr.mxu0 0.0
    %159 = vmatpush2.msra.mxu0 0.0
    %160 = vmatprep.subr.mxu0 0.0
    %161 = vmatpush2.msra.mxu0 0.0
    %162 = vmatprep.subr.mxu0 0.0
    %163 = vmatpush2.msra.mxu0 0.0
    %164 = vmatprep.subr.mxu0 0.0
    %165 = vmatpush2.msra.mxu0 0.0
    %166 = vmatprep.subr.mxu0 0.0
    %167 = vmatpush2.msra.mxu0 0.0
    %168 = vmatprep.subr.mxu0 0.0
    %169 = vmatpush2.msra.mxu0 0.0
    %170 = vmatprep.subr.mxu0 0.0
    %171 = vmatpush2.msra.mxu0 0.0
    %172 = vmatprep.subr.mxu0 0.0
    %173 = vmatpush2.msra.mxu0 0.0
    %174 = vmatprep.subr.mxu0 0.0
    %175 = vmatpush2.msra.mxu0 0.0
    %176 = vmatprep.mubr.f32.mxu0 0.0
    %177 = vmatmul.mubr.f32.gmra.mxu0 %v107
    %v178 = vpop.f32.mrf.mxu0
    %v179 = vadd.f32 0.0, %v178
    %v180 = vpop.f32.mrf.mxu0
    %181 = vmatprep.mubr.f32.mxu0 0.0
    %182 = vmatmul.mubr.f32.gmra.mxu0 %v110
    %v183 = vpop.f32.mrf.mxu0
    %v184 = vadd.f32 0.0, %v183
    %v185 = vpop.f32.mrf.mxu0
    %186 = vdwg.mxu0
    %187 = vmatprep.subr.mxu0 0.0
    %188 = vmatpush1.msra.mxu0 %v103
    %189 = vmatprep.subr.mxu0 0.0
    %190 = vmatpush1.msra.mxu0 %v102
    %191 = vmatprep.subr.mxu0 0.0
    %192 = vmatpush1.msra.mxu0 %v101
    %193 = vmatprep.subr.mxu0 0.0
    %194 = vmatpush1.msra.mxu0 %v100
    %195 = vmatprep.subr.mxu0 0.0
    %196 = vmatpush1.msra.mxu0 %v99
    %197 = vmatprep.subr.mxu0 0.0
    %198 = vmatpush1.msra.mxu0 %v98
    %199 = vmatprep.subr.mxu0 0.0
    %200 = vmatpush1.msra.mxu0 %v97
    %201 = vmatprep.subr.mxu0 0.0
    %202 = vmatpush1.msra.mxu0 %v96
    %203 = vmatprep.subr.mxu0 0.0
    %204 = vmatpush1.msra.mxu0 %v95
    %205 = vmatprep.subr.mxu0 0.0
    %206 = vmatpush1.msra.mxu0 %v94
    %207 = vmatprep.subr.mxu0 0.0
    %208 = vmatpush1.msra.mxu0 %v93
    %209 = vmatprep.subr.mxu0 0.0
    %210 = vmatpush1.msra.mxu0 %v92
    %211 = vmatprep.subr.mxu0 0.0
    %212 = vmatpush1.msra.mxu0 %v91
    %213 = vmatprep.subr.mxu0 0.0
    %214 = vmatpush1.msra.mxu0 %v90
    %215 = vmatprep.subr.mxu0 0.0
    %216 = vmatpush1.msra.mxu0 %v89
    %217 = vmatprep.subr.mxu0 0.0
    %218 = vmatpush1.msra.mxu0 %v88
    %219 = vmatprep.subr.mxu0 0.0
    %220 = vmatpush2.msra.mxu0 0.0
    %221 = vmatprep.subr.mxu0 0.0
    %222 = vmatpush2.msra.mxu0 0.0
    %223 = vmatprep.subr.mxu0 0.0
    %224 = vmatpush2.msra.mxu0 0.0
    %225 = vmatprep.subr.mxu0 0.0
    %226 = vmatpush2.msra.mxu0 0.0
    %227 = vmatprep.subr.mxu0 0.0
    %228 = vmatpush2.msra.mxu0 0.0
    %229 = vmatprep.subr.mxu0 0.0
    %230 = vmatpush2.msra.mxu0 0.0
    %231 = vmatprep.subr.mxu0 0.0
    %232 = vmatpush2.msra.mxu0 0.0
    %233 = vmatprep.subr.mxu0 0.0
    %234 = vmatpush2.msra.mxu0 0.0
    %235 = vmatprep.subr.mxu0 0.0
    %236 = vmatpush2.msra.mxu0 0.0
    %237 = vmatprep.subr.mxu0 0.0
    %238 = vmatpush2.msra.mxu0 0.0
    %239 = vmatprep.subr.mxu0 0.0
    %240 = vmatpush2.msra.mxu0 0.0
    %241 = vmatprep.subr.mxu0 0.0
    %242 = vmatpush2.msra.mxu0 0.0
    %243 = vmatprep.subr.mxu0 0.0
    %244 = vmatpush2.msra.mxu0 0.0
    %245 = vmatprep.subr.mxu0 0.0
    %246 = vmatpush2.msra.mxu0 0.0
    %247 = vmatprep.subr.mxu0 0.0
    %248 = vmatpush2.msra.mxu0 0.0
    %249 = vmatprep.subr.mxu0 0.0
    %250 = vmatpush2.msra.mxu0 0.0
    %251 = vmatprep.mubr.f32.mxu0 0.0
    %252 = vmatmul.mubr.f32.gmra.mxu0 %v179
    %v253 = vpop.f32.mrf.mxu0
    %v254 = vadd.f32 0.0, %v253
    %v255 = vpop.f32.mrf.mxu0
    %256 = vmatprep.mubr.f32.mxu0 0.0
    %257 = vmatmul.mubr.f32.gmra.mxu0 %v184
    %v258 = vpop.f32.mrf.mxu0
    %v259 = vadd.f32 0.0, %v258
    %v260 = vpop.f32.mrf.mxu0
    %261 = vdwg.mxu0
    %v262 = vmul.f32 %v84, %v254
    %v263 = vmul.f32 %v85, %v259
    %v264 = vmax.f32 %v262, 0.0
    %v265 = vmax.f32 %v263, 0.0
    %v266 = vld [vmem:[#allocation8] sm:$0xff]
    %v267 = vld [vmem:[#allocation8 + $0x8] sm:$0xff]
    %v268 = vld [vmem:[#allocation8 + $0x10] sm:$0xff]
    %v269 = vld [vmem:[#allocation8 + $0x18] sm:$0xff]
    %v270 = vld [vmem:[#allocation8 + $0x20] sm:$0xff]
    %v271 = vld [vmem:[#allocation8 + $0x28] sm:$0xff]
    %v272 = vld [vmem:[#allocation8 + $0x30] sm:$0xff]
    %v273 = vld [vmem:[#allocation8 + $0x38] sm:$0xff]
    %v274 = vld [vmem:[#allocation8 + $0x40] sm:$0xff]
    %v275 = vld [vmem:[#allocation8 + $0x48] sm:$0xff]
    %v276 = vld [vmem:[#allocation8 + $0x50] sm:$0xff]
    %v277 = vld [vmem:[#allocation8 + $0x58] sm:$0xff]
    %v278 = vld [vmem:[#allocation8 + $0x60] sm:$0xff]
    %v279 = vld [vmem:[#allocation8 + $0x68] sm:$0xff]
    %v280 = vld [vmem:[#allocation8 + $0x70] sm:$0xff]
    %v281 = vld [vmem:[#allocation8 + $0x78] sm:$0xff]
    %v282 = vmul.f32 %v84, %v264
    %v283 = vmul.f32 %v85, %v265
    %284 = vmatprep.subr.mxu0 0.0
    %285 = vmatpush1.msra.mxu0 %v281
    %286 = vmatprep.subr.mxu0 0.0
    %287 = vmatpush1.msra.mxu0 %v280
    %288 = vmatprep.subr.mxu0 0.0
    %289 = vmatpush1.msra.mxu0 %v279
    %290 = vmatprep.subr.mxu0 0.0
    %291 = vmatpush1.msra.mxu0 %v278
    %292 = vmatprep.subr.mxu0 0.0
    %293 = vmatpush1.msra.mxu0 %v277
    %294 = vmatprep.subr.mxu0 0.0
    %295 = vmatpush1.msra.mxu0 %v276
    %296 = vmatprep.subr.mxu0 0.0
    %297 = vmatpush1.msra.mxu0 %v275
    %298 = vmatprep.subr.mxu0 0.0
    %299 = vmatpush1.msra.mxu0 %v274
    %300 = vmatprep.subr.mxu0 0.0
    %301 = vmatpush1.msra.mxu0 %v273
    %302 = vmatprep.subr.mxu0 0.0
    %303 = vmatpush1.msra.mxu0 %v272
    %304 = vmatprep.subr.mxu0 0.0
    %305 = vmatpush1.msra.mxu0 %v271
    %306 = vmatprep.subr.mxu0 0.0
    %307 = vmatpush1.msra.mxu0 %v270
    %308 = vmatprep.subr.mxu0 0.0
    %309 = vmatpush1.msra.mxu0 %v269
    %310 = vmatprep.subr.mxu0 0.0
    %311 = vmatpush1.msra.mxu0 %v268
    %312 = vmatprep.subr.mxu0 0.0
    %313 = vmatpush1.msra.mxu0 %v267
    %314 = vmatprep.subr.mxu0 0.0
    %315 = vmatpush1.msra.mxu0 %v266
    %316 = vmatprep.subr.mxu0 0.0
    %317 = vmatpush2.msra.mxu0 0.0
    %318 = vmatprep.subr.mxu0 0.0
    %319 = vmatpush2.msra.mxu0 0.0
    %320 = vmatprep.subr.mxu0 0.0
    %321 = vmatpush2.msra.mxu0 0.0
    %322 = vmatprep.subr.mxu0 0.0
    %323 = vmatpush2.msra.mxu0 0.0
    %324 = vmatprep.subr.mxu0 0.0
    %325 = vmatpush2.msra.mxu0 0.0
    %326 = vmatprep.subr.mxu0 0.0
    %327 = vmatpush2.msra.mxu0 0.0
    %328 = vmatprep.subr.mxu0 0.0
    %329 = vmatpush2.msra.mxu0 0.0
    %330 = vmatprep.subr.mxu0 0.0
    %331 = vmatpush2.msra.mxu0 0.0
    %332 = vmatprep.subr.mxu0 0.0
    %333 = vmatpush2.msra.mxu0 0.0
    %334 = vmatprep.subr.mxu0 0.0
    %335 = vmatpush2.msra.mxu0 0.0
    %336 = vmatprep.subr.mxu0 0.0
    %337 = vmatpush2.msra.mxu0 0.0
    %338 = vmatprep.subr.mxu0 0.0
    %339 = vmatpush2.msra.mxu0 0.0
    %340 = vmatprep.subr.mxu0 0.0
    %341 = vmatpush2.msra.mxu0 0.0
    %342 = vmatprep.subr.mxu0 0.0
    %343 = vmatpush2.msra.mxu0 0.0
    %344 = vmatprep.subr.mxu0 0.0
    %345 = vmatpush2.msra.mxu0 0.0
    %346 = vmatprep.subr.mxu0 0.0
    %347 = vmatpush2.msra.mxu0 0.0
    %348 = vmatprep.mubr.f32.mxu0 0.0
    %349 = vmatmul.mubr.f32.gmra.mxu0 %v282
    %v350 = vpop.f32.mrf.mxu0
    %v351 = vadd.f32 0.0, %v350
    %v352 = vpop.f32.mrf.mxu0
    %353 = vmatprep.mubr.f32.mxu0 0.0
    %354 = vmatmul.mubr.f32.gmra.mxu0 %v283
    %v355 = vpop.f32.mrf.mxu0
    %v356 = vadd.f32 0.0, %v355
    %v357 = vpop.f32.mrf.mxu0
    %358 = vdwg.mxu0
    %359 = vmatprep.subr.mxu0 0.0
    %360 = vmatpush1.msra.mxu0 0.0
    %361 = vmatprep.subr.mxu0 0.0
    %362 = vmatpush1.msra.mxu0 0.0
    %363 = vmatprep.subr.mxu0 0.0
    %364 = vmatpush1.msra.mxu0 0.0
    %365 = vmatprep.subr.mxu0 0.0
    %366 = vmatpush1.msra.mxu0 0.0
    %367 = vmatprep.subr.mxu0 0.0
    %368 = vmatpush1.msra.mxu0 0.0
    %369 = vmatprep.subr.mxu0 0.0
    %370 = vmatpush1.msra.mxu0 0.0
    %371 = vmatprep.subr.mxu0 0.0
    %372 = vmatpush1.msra.mxu0 0.0
    %373 = vmatprep.subr.mxu0 0.0
    %374 = vmatpush1.msra.mxu0 0.0
    %375 = vmatprep.subr.mxu0 0.0
    %376 = vmatpush1.msra.mxu0 0.0
    %377 = vmatprep.subr.mxu0 0.0
    %378 = vmatpush1.msra.mxu0 0.0
    %379 = vmatprep.subr.mxu0 0.0
    %380 = vmatpush1.msra.mxu0 0.0
    %381 = vmatprep.subr.mxu0 0.0
    %382 = vmatpush1.msra.mxu0 0.0
    %383 = vmatprep.subr.mxu0 0.0
    %384 = vmatpush1.msra.mxu0 0.0
    %385 = vmatprep.subr.mxu0 0.0
    %386 = vmatpush1.msra.mxu0 0.0
    %387 = vmatprep.subr.mxu0 0.0
    %388 = vmatpush1.msra.mxu0 %v356
    %389 = vmatprep.subr.mxu0 0.0
    %390 = vmatpush1.msra.mxu0 %v351
    %391 = vmatprep.subr.mxu0 0.0
    %392 = vmatpush2.msra.mxu0 0.0
    %393 = vmatprep.subr.mxu0 0.0
    %394 = vmatpush2.msra.mxu0 0.0
    %395 = vmatprep.subr.mxu0 0.0
    %396 = vmatpush2.msra.mxu0 0.0
    %397 = vmatprep.subr.mxu0 0.0
    %398 = vmatpush2.msra.mxu0 0.0
    %399 = vmatprep.subr.mxu0 0.0
    %400 = vmatpush2.msra.mxu0 0.0
    %401 = vmatprep.subr.mxu0 0.0
    %402 = vmatpush2.msra.mxu0 0.0
    %403 = vmatprep.subr.mxu0 0.0
    %404 = vmatpush2.msra.mxu0 0.0
    %405 = vmatprep.subr.mxu0 0.0
    %406 = vmatpush2.msra.mxu0 0.0
    %407 = vmatprep.subr.mxu0 0.0
    %408 = vmatpush2.msra.mxu0 0.0
    %409 = vmatprep.subr.mxu0 0.0
    %410 = vmatpush2.msra.mxu0 0.0
    %411 = vmatprep.subr.mxu0 0.0
    %412 = vmatpush2.msra.mxu0 0.0
    %413 = vmatprep.subr.mxu0 0.0
    %414 = vmatpush2.msra.mxu0 0.0
    %415 = vmatprep.subr.mxu0 0.0
    %416 = vmatpush2.msra.mxu0 0.0
    %417 = vmatprep.subr.mxu0 0.0
    %418 = vmatpush2.msra.mxu0 0.0
    %419 = vmatprep.subr.mxu0 0.0
    %420 = vmatpush2.msra.mxu0 0.0
    %421 = vmatprep.subr.mxu0 0.0
    %422 = vmatpush2.msra.mxu0 0.0
    %423 = vmatprep.mubr.f32.mxu0 0.0
    %424 = vmatmul.mubr.f32.gmra.mxu0 %v107
    %v425 = vpop.f32.mrf.mxu0
    %v426 = vadd.f32 0.0, %v425
    %v427 = vpop.f32.mrf.mxu0
    %428 = vmatprep.mubr.f32.mxu0 0.0
    %429 = vmatmul.mubr.f32.gmra.mxu0 %v110
    %v430 = vpop.f32.mrf.mxu0
    %v431 = vadd.f32 0.0, %v430
    %v432 = vpop.f32.mrf.mxu0
    %433 = vdwg.mxu0
    %v434 = vmul.f32 %v84, %v426
    %v435 = vmul.f32 %v85, %v431
    %436 = vst [vmem:[#allocation10] sm:$0xff] %v434
    %437 = vst [vmem:[#allocation10 + $0x8] sm:$0xff] %v435
    // Predicated region
    $region34: #{tpu_custom_call.1} parent=1 // pred_check
      _
    $region35: #{tpu_custom_call.1} parent=1 // pred_check_branch
      %439 = sbr.rel (0) target = $region37
    $region36: #{tpu_custom_call.1} parent=1 // pred_region
      %s441 = ssub.s32 256, 256
      %442 = vsyncadd [#allocation4], %s441
      %s443 = sshll.u32 [#allocation10], 4
      %s444 = int_to_ptr.vmem [resolvable:$true] %s443
      %449 = dma.vmem_to_hbm [thread:$0]  %s444, 256, %s4, [#allocation4], 128, 128, 8
    $region37: #{tpu_custom_call.1} parent=1 // pred_fallthru
      _
    // Predicated region
    $region38: #{tpu_custom_call.1} parent=1 // pred_check
      _
    $region39: #{tpu_custom_call.1} parent=1 // pred_check_branch
      %451 = sbr.rel (0) target = $region41
    $region40: #{tpu_custom_call.1} parent=1 // pred_region
      %452 = dma.done [#allocation4], 256
    $region41: #{tpu_custom_call.1} parent=1 // pred_fallthru
      _
    %453 = vsyncpa [#allocation3], 1
    %454 = vsyncpa [#allocation6], 1
    %455 = vsyncpa [#allocation9], 1
    %456 = vsyncpa [#allocation4], 1

</llo_original>
